<compile_context>
chip_gen: v7x
topology: tpu7x:2x2x1
jax: 0.10.0
libtpu: 0.0.40
codegen_flags: <defaults>
</compile_context>

<pallas_src>
import jax
import jax.numpy as jnp
from jax import lax
from jax.experimental import pallas as pl
from jax.experimental.pallas import tpu as pltpu


def _basic_block_kernel(x_ref, w1_ref, w2_ref, b1_ref, b2_ref, out_ref,
                        xpad_scr, midpad_scr):
    """One batch block (Nb images) per grid step.

    x_ref:      (Nb, H, W*Cin)    bf16  un-padded input (conv1 input + shortcut)
    w1_ref:     (3, W*Cin, W*C)   bf16  banded conv1 weights (bn1 scale folded)
    w2_ref:     (3, W*C,  W*C)    bf16  banded conv2 weights (bn2 scale folded)
    b1_ref:     (1, W*C)          f32   bn1 bias (broadcast over w)
    b2_ref:     (1, W*C)          f32   bn2 bias (broadcast over w)
    out_ref:    (Nb, H, W*C)      f32   block output
    xpad_scr:   (Nb, H+2, W*Cin)  bf16  VMEM scratch: H-padded conv1 input
    midpad_scr: (Nb, H+2, W*C)    bf16  VMEM scratch: H-padded conv2 input
    """
    Nb, H, WCin = x_ref.shape
    WC = out_ref.shape[-1]
    M = Nb * H

    # Zero only the 1-row top/bottom halos (interior is fully overwritten below;
    # width zero-padding is folded into the banded weights, so there is no W halo).
    xpad_scr[:, 0:1, :] = jnp.zeros((Nb, 1, WCin), jnp.bfloat16)
    xpad_scr[:, H + 1:H + 2, :] = jnp.zeros((Nb, 1, WCin), jnp.bfloat16)
    midpad_scr[:, 0:1, :] = jnp.zeros((Nb, 1, WC), jnp.bfloat16)
    midpad_scr[:, H + 1:H + 2, :] = jnp.zeros((Nb, 1, WC), jnp.bfloat16)

    # Single input load; the identity shortcut reuses it.
    x = x_ref[...]                                        # (Nb, H, W*Cin) bf16
    xpad_scr[:, pl.ds(1, H), :] = x

    # ---- conv1 (+ folded bn1 scale): 3 row-shifted matmuls, f32 accumulation --
    acc1 = jnp.zeros((M, WC), jnp.float32)
    for ky in range(3):
        rows = xpad_scr[:, pl.ds(ky, H), :].reshape(M, WCin)
        acc1 = acc1 + jnp.dot(rows, w1_ref[ky],
                              preferred_element_type=jnp.float32)
    y1 = jnp.maximum(acc1 + b1_ref[...], 0.0)             # bn1 bias + ReLU (f32)
    midpad_scr[:, pl.ds(1, H), :] = (
        y1.reshape(Nb, H, WC).astype(jnp.bfloat16))

    # ---- conv2 (+ folded bn2 scale) + bn2 bias + identity shortcut + ReLU -----
    acc2 = jnp.zeros((M, WC), jnp.float32)
    for ky in range(3):
        rows = midpad_scr[:, pl.ds(ky, H), :].reshape(M, WC)
        acc2 = acc2 + jnp.dot(rows, w2_ref[ky],
                              preferred_element_type=jnp.float32)
    y2 = acc2 + b2_ref[...] + x.reshape(M, WCin).astype(jnp.float32)
    out_ref[...] = jnp.maximum(y2, 0.0).reshape(Nb, H, WC)


def _banded_conv_weights(w_oihw, scale, W, dtype=jnp.bfloat16):
    """Fold the BN scale into w and lay the 3x3 conv out as 3 banded matrices
    of shape (W*Cin, W*Cout), one per ky tap.  Width zero-padding (padding=1)
    is part of the band structure (out-of-range taps contribute nothing)."""
    C_out, C_in, KH, KW = w_oihw.shape
    assert (KH, KW) == (3, 3)
    w = w_oihw.astype(jnp.float32) * scale.astype(jnp.float32)[:, None, None, None]
    w = jnp.transpose(w, (2, 3, 1, 0))                    # (ky, kx, Cin, Cout)
    idx = jnp.arange(W)
    bands = []
    for ky in range(3):
        band = jnp.zeros((W, C_in, W, C_out), jnp.float32)
        for kx in range(3):
            # sel[wi, wo] = 1  iff  input column wi feeds output column wo via tap kx
            sel = (idx[:, None] == idx[None, :] + (kx - 1)).astype(jnp.float32)
            band = band + jnp.einsum('ab,io->aibo', sel, w[ky, kx])
        bands.append(band.reshape(W * C_in, W * C_out))
    return jnp.stack(bands, axis=0).astype(dtype)         # (3, W*Cin, W*Cout)


def _vmem_footprint_bytes(nb, H, W, Cin, C):
    bf2, f4 = 2, 4
    in_blk = nb * H * W * Cin * bf2
    out_blk = nb * H * W * C * f4
    w_res = 3 * W * Cin * W * C * bf2 + 3 * W * C * W * C * bf2 + 2 * W * C * f4
    scr = nb * (H + 2) * W * Cin * bf2 + nb * (H + 2) * W * C * bf2
    # double-buffered in/out blocks + (conservatively double-buffered) weights + scratch
    return 2 * (in_blk + out_blk) + 2 * w_res + scr


def _pick_batch_block(N, H, W, Cin, C, max_batch_block=8,
                      vmem_budget_bytes=24 << 20):
    # Keep >= 2 grid steps when possible (both v7x TensorCores get work, and the
    # auto-pipeliner has something to overlap) and stay under a VMEM budget that
    # is safe for v7x's 64 MiB physical VMEM.
    cap = min(max_batch_block, max(1, N // 2))
    nb = 1
    for d in range(1, cap + 1):
        if N % d == 0 and _vmem_footprint_bytes(d, H, W, Cin, C) <= vmem_budget_bytes:
            nb = d
    return nb


def basic_block_pallas(x_nchw, w1_oihw, w2_oihw, bn1, bn2, eps=1e-5,
                       max_batch_block=8):
    gamma1, beta1, mean1, var1 = bn1
    gamma2, beta2, mean2, var2 = bn2
    s1 = gamma1 / jnp.sqrt(var1 + eps)
    b1 = beta1 - mean1 * s1
    s2 = gamma2 / jnp.sqrt(var2 + eps)
    b2 = beta2 - mean2 * s2

    N, Cin, H, W = x_nchw.shape
    C = w1_oihw.shape[0]
    if Cin != C:
        raise NotImplementedError(
            "basic_block_pallas only implements the stride=1, "
            "in_planes == planes (identity shortcut) configuration.")
    # TODO(synk): stride!=1 / option-'A' downsample shortcut not implemented.

    Nb = _pick_batch_block(N, H, W, Cin, C, max_batch_block)

    # ---- trace-time prep (free): BN fold, banded weights, lane-dense layout ---
    w1b = _banded_conv_weights(w1_oihw, s1, W)             # (3, W*Cin, W*C) bf16
    w2b = _banded_conv_weights(w2_oihw, s2, W)             # (3, W*C,  W*C) bf16
    b1f = jnp.tile(b1.astype(jnp.float32), W).reshape(1, W * C)
    b2f = jnp.tile(b2.astype(jnp.float32), W).reshape(1, W * C)

    x = jnp.transpose(x_nchw, (0, 2, 3, 1))                # NCHW -> NHWC
    x = x.reshape(N, H, W * Cin).astype(jnp.bfloat16)      # lane-dense, bf16

    vmem_limit = _vmem_footprint_bytes(Nb, H, W, Cin, C) + (4 << 20)
    vmem_limit = int(min(max(vmem_limit, 16 << 20), 64 << 20))

    out = pl.pallas_call(
        _basic_block_kernel,
        out_shape=jax.ShapeDtypeStruct((N, H, W * C), jnp.float32),
        grid=(N // Nb,),
        in_specs=[
            pl.BlockSpec((Nb, H, W * Cin), lambda n: (n, 0, 0)),
            pl.BlockSpec((3, W * Cin, W * C), lambda n: (0, 0, 0)),
            pl.BlockSpec((3, W * C, W * C), lambda n: (0, 0, 0)),
            pl.BlockSpec((1, W * C), lambda n: (0, 0)),
            pl.BlockSpec((1, W * C), lambda n: (0, 0)),
        ],
        out_specs=pl.BlockSpec((Nb, H, W * C), lambda n: (n, 0, 0)),
        scratch_shapes=[
            pltpu.VMEM((Nb, H + 2, W * Cin), jnp.bfloat16),
            pltpu.VMEM((Nb, H + 2, W * C), jnp.bfloat16),
        ],
        compiler_params=pltpu.CompilerParams(
            dimension_semantics=("parallel",),
            vmem_limit_bytes=vmem_limit),
    )(x, w1b, w2b, b1f, b2f)

    out = out.reshape(N, H, W, C)
    return jnp.transpose(out, (0, 3, 1, 2))                # back to NCHW


def basic_block_reference(x_nchw, w1_oihw, w2_oihw, bn1, bn2, eps=1e-5):
    """Pure-JAX reference (same eval-mode BN semantics) for correctness checking."""
    gamma1, beta1, mean1, var1 = bn1
    gamma2, beta2, mean2, var2 = bn2

    def bn(x, g, b, m, v):
        inv = (g / jnp.sqrt(v + eps))[None, :, None, None]
        return (x - m[None, :, None, None]) * inv + b[None, :, None, None]

    dn = ('NCHW', 'OIHW', 'NCHW')
    out = lax.conv_general_dilated(x_nchw, w1_oihw, (1, 1), 'SAME',
                                   dimension_numbers=dn,
                                   precision=lax.Precision.HIGHEST)
    out = jnp.maximum(bn(out, gamma1, beta1, mean1, var1), 0.0)
    out = lax.conv_general_dilated(out, w2_oihw, (1, 1), 'SAME',
                                   dimension_numbers=dn,
                                   precision=lax.Precision.HIGHEST)
    out = bn(out, gamma2, beta2, mean2, var2) + x_nchw
    return jnp.maximum(out, 0.0)


if __name__ == "__main__":
    # BasicBlock(in_planes=4, planes=4, stride=1) -> identity shortcut
    N, C, H, W = 2, 4, 16, 16
    key = jax.random.PRNGKey(0)
    ks = jax.random.split(key, 11)

    x = jax.random.normal(ks[0], (N, C, H, W), jnp.float32)
    fan_in = C * 3 * 3
    w1 = jax.random.normal(ks[1], (C, C, 3, 3), jnp.float32) * (2.0 / fan_in) ** 0.5
    w2 = jax.random.normal(ks[2], (C, C, 3, 3), jnp.float32) * (2.0 / fan_in) ** 0.5
    bn1 = (jax.random.uniform(ks[3], (C,), jnp.float32, 0.5, 1.5),   # gamma
           jax.random.normal(ks[4], (C,), jnp.float32) * 0.1,        # beta
           jax.random.normal(ks[5], (C,), jnp.float32) * 0.1,        # running_mean
           jax.random.uniform(ks[6], (C,), jnp.float32, 0.5, 1.5))   # running_var
    bn2 = (jax.random.uniform(ks[7], (C,), jnp.float32, 0.5, 1.5),
           jax.random.normal(ks[8], (C,), jnp.float32) * 0.1,
           jax.random.normal(ks[9], (C,), jnp.float32) * 0.1,
           jax.random.uniform(ks[10], (C,), jnp.float32, 0.5, 1.5))

    out = jax.block_until_ready(basic_block_pallas(x, w1, w2, bn1, bn2))
    ref = jax.block_until_ready(basic_block_reference(x, w1, w2, bn1, bn2))

    assert out.shape == (N, C, H, W)
    # Tolerance accounts for bf16 MXU operands (reference is f32 / HIGHEST);
    # structural errors would be O(1), well above this threshold.
    max_err = float(jnp.max(jnp.abs(out - ref)))
    tol = 2e-2 + 5e-2 * float(jnp.max(jnp.abs(ref)))
    assert max_err < tol, f"mismatch vs reference: max abs err {max_err} >= {tol}"
    print("KERNEL_OK")
</pallas_src>

<mosaic_0001>
module attributes {stable_mosaic.version = 11 : i64} {
  func.func @_basic_block_kernel(%arg0: i32, %arg1: memref<1x16x64xbf16, #tpu.memory_space<vmem>>, %arg2: memref<3x64x64xbf16, #tpu.memory_space<vmem>>, %arg3: memref<3x64x64xbf16, #tpu.memory_space<vmem>>, %arg4: memref<1x64xf32, #tpu.memory_space<vmem>>, %arg5: memref<1x64xf32, #tpu.memory_space<vmem>>, %arg6: memref<1x16x64xf32, #tpu.memory_space<vmem>>, %arg7: memref<1x18x64xbf16, #tpu.memory_space<vmem>>, %arg8: memref<1x18x64xbf16, #tpu.memory_space<vmem>>) attributes {dimension_semantics = [#tpu.dimension_semantics<parallel>], iteration_bounds = array<i64: 2>, scalar_prefetch = 0 : i64, scratch_operands = 2 : i64, tpu.core_type = #tpu.core_type<tc>, window_params = [{transform_indices = @transform_0, window_bounds = array<i64: 1, 16, 64>}, {pipeline_mode = #tpu.pipeline_mode<synchronous>, transform_indices = @transform_1, window_bounds = array<i64: 3, 64, 64>}, {pipeline_mode = #tpu.pipeline_mode<synchronous>, transform_indices = @transform_2, window_bounds = array<i64: 3, 64, 64>}, {pipeline_mode = #tpu.pipeline_mode<synchronous>, transform_indices = @transform_3, window_bounds = array<i64: 1, 64>}, {pipeline_mode = #tpu.pipeline_mode<synchronous>, transform_indices = @transform_4, window_bounds = array<i64: 1, 64>}, {transform_indices = @transform_5, window_bounds = array<i64: 1, 16, 64>}]} {
    %cst = arith.constant 0.000000e+00 : bf16
    %0 = vector.broadcast %cst : bf16 to vector<1x1x64xbf16>
    %c0 = arith.constant 0 : index
    %c0_0 = arith.constant 0 : index
    %c0_1 = arith.constant 0 : index
    %1 = vector.load %arg7[%c0, %c0_0, %c0_1] : memref<1x18x64xbf16, #tpu.memory_space<vmem>>, vector<1x1x64xbf16>
    tpu.vector_store %arg7[%c0, %c0_0, %c0_1], %0 {strides = array<i32>} : memref<1x18x64xbf16, #tpu.memory_space<vmem>>, vector<1x1x64xbf16>,
    %cst_2 = arith.constant 0.000000e+00 : bf16
    %2 = vector.broadcast %cst_2 : bf16 to vector<1x1x64xbf16>
    %c0_3 = arith.constant 0 : index
    %c17 = arith.constant 17 : index
    %c0_4 = arith.constant 0 : index
    %3 = vector.load %arg7[%c0_3, %c17, %c0_4] : memref<1x18x64xbf16, #tpu.memory_space<vmem>>, vector<1x1x64xbf16>
    tpu.vector_store %arg7[%c0_3, %c17, %c0_4], %2 {strides = array<i32>} : memref<1x18x64xbf16, #tpu.memory_space<vmem>>, vector<1x1x64xbf16>,
    %cst_5 = arith.constant 0.000000e+00 : bf16
    %4 = vector.broadcast %cst_5 : bf16 to vector<1x1x64xbf16>
    %c0_6 = arith.constant 0 : index
    %c0_7 = arith.constant 0 : index
    %c0_8 = arith.constant 0 : index
    %5 = vector.load %arg8[%c0_6, %c0_7, %c0_8] : memref<1x18x64xbf16, #tpu.memory_space<vmem>>, vector<1x1x64xbf16>
    tpu.vector_store %arg8[%c0_6, %c0_7, %c0_8], %4 {strides = array<i32>} : memref<1x18x64xbf16, #tpu.memory_space<vmem>>, vector<1x1x64xbf16>,
    %cst_9 = arith.constant 0.000000e+00 : bf16
    %6 = vector.broadcast %cst_9 : bf16 to vector<1x1x64xbf16>
    %c0_10 = arith.constant 0 : index
    %c17_11 = arith.constant 17 : index
    %c0_12 = arith.constant 0 : index
    %7 = vector.load %arg8[%c0_10, %c17_11, %c0_12] : memref<1x18x64xbf16, #tpu.memory_space<vmem>>, vector<1x1x64xbf16>
    tpu.vector_store %arg8[%c0_10, %c17_11, %c0_12], %6 {strides = array<i32>} : memref<1x18x64xbf16, #tpu.memory_space<vmem>>, vector<1x1x64xbf16>,
    %c0_13 = arith.constant 0 : index
    %c0_14 = arith.constant 0 : index
    %c0_15 = arith.constant 0 : index
    %8 = vector.load %arg1[%c0_13, %c0_14, %c0_15] : memref<1x16x64xbf16, #tpu.memory_space<vmem>>, vector<1x16x64xbf16>
    %c0_16 = arith.constant 0 : index
    %c1 = arith.constant 1 : index
    %c0_17 = arith.constant 0 : index
    %9 = vector.load %arg7[%c0_16, %c1, %c0_17] : memref<1x18x64xbf16, #tpu.memory_space<vmem>>, vector<1x16x64xbf16>
    tpu.vector_store %arg7[%c0_16, %c1, %c0_17], %8 {strides = array<i32>} : memref<1x18x64xbf16, #tpu.memory_space<vmem>>, vector<1x16x64xbf16>,
    %cst_18 = arith.constant 0.000000e+00 : f32
    %10 = vector.broadcast %cst_18 : f32 to vector<16x64xf32>
    %c0_19 = arith.constant 0 : index
    %c0_20 = arith.constant 0 : index
    %c0_21 = arith.constant 0 : index
    %11 = vector.load %arg7[%c0_19, %c0_20, %c0_21] : memref<1x18x64xbf16, #tpu.memory_space<vmem>>, vector<1x16x64xbf16>
    %12 = vector.shape_cast %11 : vector<1x16x64xbf16> to vector<16x64xbf16>
    %c0_22 = arith.constant 0 : index
    %c0_23 = arith.constant 0 : index
    %c0_24 = arith.constant 0 : index
    %13 = vector.load %arg2[%c0_22, %c0_23, %c0_24] : memref<3x64x64xbf16, #tpu.memory_space<vmem>>, vector<1x64x64xbf16>
    %14 = vector.shape_cast %13 : vector<1x64x64xbf16> to vector<64x64xbf16>
    %cst_25 = arith.constant dense<0.000000e+00> : vector<16x64xf32>
    %15 = tpu.matmul %12, %14, %cst_25 {dimension_numbers = #tpu.dot_dimension_numbers<[1], [0], [0], [1], [0, 0, 1, 1], [], []>} : vector<16x64xbf16>, vector<64x64xbf16>, vector<16x64xf32> -> vector<16x64xf32>
    %16 = arith.addf %10, %15 : vector<16x64xf32>
    %c0_26 = arith.constant 0 : index
    %c1_27 = arith.constant 1 : index
    %c0_28 = arith.constant 0 : index
    %17 = vector.load %arg7[%c0_26, %c1_27, %c0_28] : memref<1x18x64xbf16, #tpu.memory_space<vmem>>, vector<1x16x64xbf16>
    %18 = vector.shape_cast %17 : vector<1x16x64xbf16> to vector<16x64xbf16>
    %c1_29 = arith.constant 1 : index
    %c0_30 = arith.constant 0 : index
    %c0_31 = arith.constant 0 : index
    %19 = vector.load %arg2[%c1_29, %c0_30, %c0_31] : memref<3x64x64xbf16, #tpu.memory_space<vmem>>, vector<1x64x64xbf16>
    %20 = vector.shape_cast %19 : vector<1x64x64xbf16> to vector<64x64xbf16>
    %cst_32 = arith.constant dense<0.000000e+00> : vector<16x64xf32>
    %21 = tpu.matmul %18, %20, %cst_32 {dimension_numbers = #tpu.dot_dimension_numbers<[1], [0], [0], [1], [0, 0, 1, 1], [], []>} : vector<16x64xbf16>, vector<64x64xbf16>, vector<16x64xf32> -> vector<16x64xf32>
    %22 = arith.addf %16, %21 : vector<16x64xf32>
    %c0_33 = arith.constant 0 : index
    %c2 = arith.constant 2 : index
    %c0_34 = arith.constant 0 : index
    %23 = vector.load %arg7[%c0_33, %c2, %c0_34] : memref<1x18x64xbf16, #tpu.memory_space<vmem>>, vector<1x16x64xbf16>
    %24 = vector.shape_cast %23 : vector<1x16x64xbf16> to vector<16x64xbf16>
    %c2_35 = arith.constant 2 : index
    %c0_36 = arith.constant 0 : index
    %c0_37 = arith.constant 0 : index
    %25 = vector.load %arg2[%c2_35, %c0_36, %c0_37] : memref<3x64x64xbf16, #tpu.memory_space<vmem>>, vector<1x64x64xbf16>
    %26 = vector.shape_cast %25 : vector<1x64x64xbf16> to vector<64x64xbf16>
    %cst_38 = arith.constant dense<0.000000e+00> : vector<16x64xf32>
    %27 = tpu.matmul %24, %26, %cst_38 {dimension_numbers = #tpu.dot_dimension_numbers<[1], [0], [0], [1], [0, 0, 1, 1], [], []>} : vector<16x64xbf16>, vector<64x64xbf16>, vector<16x64xf32> -> vector<16x64xf32>
    %28 = arith.addf %22, %27 : vector<16x64xf32>
    %c0_39 = arith.constant 0 : index
    %c0_40 = arith.constant 0 : index
    %29 = vector.load %arg4[%c0_39, %c0_40] : memref<1x64xf32, #tpu.memory_space<vmem>>, vector<1x64xf32>
    %30 = vector.broadcast %29 : vector<1x64xf32> to vector<16x64xf32>
    %31 = arith.addf %28, %30 : vector<16x64xf32>
    %cst_41 = arith.constant 0.000000e+00 : f32
    %32 = vector.broadcast %cst_41 : f32 to vector<16x64xf32>
    %33 = arith.maximumf %31, %32 : vector<16x64xf32>
    %34 = vector.shape_cast %33 : vector<16x64xf32> to vector<1x16x64xf32>
    %35 = arith.truncf %34 : vector<1x16x64xf32> to vector<1x16x64xbf16>
    %c0_42 = arith.constant 0 : index
    %c1_43 = arith.constant 1 : index
    %c0_44 = arith.constant 0 : index
    %36 = vector.load %arg8[%c0_42, %c1_43, %c0_44] : memref<1x18x64xbf16, #tpu.memory_space<vmem>>, vector<1x16x64xbf16>
    tpu.vector_store %arg8[%c0_42, %c1_43, %c0_44], %35 {strides = array<i32>} : memref<1x18x64xbf16, #tpu.memory_space<vmem>>, vector<1x16x64xbf16>,
    %cst_45 = arith.constant 0.000000e+00 : f32
    %37 = vector.broadcast %cst_45 : f32 to vector<16x64xf32>
    %c0_46 = arith.constant 0 : index
    %c0_47 = arith.constant 0 : index
    %c0_48 = arith.constant 0 : index
    %38 = vector.load %arg8[%c0_46, %c0_47, %c0_48] : memref<1x18x64xbf16, #tpu.memory_space<vmem>>, vector<1x16x64xbf16>
    %39 = vector.shape_cast %38 : vector<1x16x64xbf16> to vector<16x64xbf16>
    %c0_49 = arith.constant 0 : index
    %c0_50 = arith.constant 0 : index
    %c0_51 = arith.constant 0 : index
    %40 = vector.load %arg3[%c0_49, %c0_50, %c0_51] : memref<3x64x64xbf16, #tpu.memory_space<vmem>>, vector<1x64x64xbf16>
    %41 = vector.shape_cast %40 : vector<1x64x64xbf16> to vector<64x64xbf16>
    %cst_52 = arith.constant dense<0.000000e+00> : vector<16x64xf32>
    %42 = tpu.matmul %39, %41, %cst_52 {dimension_numbers = #tpu.dot_dimension_numbers<[1], [0], [0], [1], [0, 0, 1, 1], [], []>} : vector<16x64xbf16>, vector<64x64xbf16>, vector<16x64xf32> -> vector<16x64xf32>
    %43 = arith.addf %37, %42 : vector<16x64xf32>
    %c0_53 = arith.constant 0 : index
    %c1_54 = arith.constant 1 : index
    %c0_55 = arith.constant 0 : index
    %44 = vector.load %arg8[%c0_53, %c1_54, %c0_55] : memref<1x18x64xbf16, #tpu.memory_space<vmem>>, vector<1x16x64xbf16>
    %45 = vector.shape_cast %44 : vector<1x16x64xbf16> to vector<16x64xbf16>
    %c1_56 = arith.constant 1 : index
    %c0_57 = arith.constant 0 : index
    %c0_58 = arith.constant 0 : index
    %46 = vector.load %arg3[%c1_56, %c0_57, %c0_58] : memref<3x64x64xbf16, #tpu.memory_space<vmem>>, vector<1x64x64xbf16>
    %47 = vector.shape_cast %46 : vector<1x64x64xbf16> to vector<64x64xbf16>
    %cst_59 = arith.constant dense<0.000000e+00> : vector<16x64xf32>
    %48 = tpu.matmul %45, %47, %cst_59 {dimension_numbers = #tpu.dot_dimension_numbers<[1], [0], [0], [1], [0, 0, 1, 1], [], []>} : vector<16x64xbf16>, vector<64x64xbf16>, vector<16x64xf32> -> vector<16x64xf32>
    %49 = arith.addf %43, %48 : vector<16x64xf32>
    %c0_60 = arith.constant 0 : index
    %c2_61 = arith.constant 2 : index
    %c0_62 = arith.constant 0 : index
    %50 = vector.load %arg8[%c0_60, %c2_61, %c0_62] : memref<1x18x64xbf16, #tpu.memory_space<vmem>>, vector<1x16x64xbf16>
    %51 = vector.shape_cast %50 : vector<1x16x64xbf16> to vector<16x64xbf16>
    %c2_63 = arith.constant 2 : index
    %c0_64 = arith.constant 0 : index
    %c0_65 = arith.constant 0 : index
    %52 = vector.load %arg3[%c2_63, %c0_64, %c0_65] : memref<3x64x64xbf16, #tpu.memory_space<vmem>>, vector<1x64x64xbf16>
    %53 = vector.shape_cast %52 : vector<1x64x64xbf16> to vector<64x64xbf16>
    %cst_66 = arith.constant dense<0.000000e+00> : vector<16x64xf32>
    %54 = tpu.matmul %51, %53, %cst_66 {dimension_numbers = #tpu.dot_dimension_numbers<[1], [0], [0], [1], [0, 0, 1, 1], [], []>} : vector<16x64xbf16>, vector<64x64xbf16>, vector<16x64xf32> -> vector<16x64xf32>
    %55 = arith.addf %49, %54 : vector<16x64xf32>
    %c0_67 = arith.constant 0 : index
    %c0_68 = arith.constant 0 : index
    %56 = vector.load %arg5[%c0_67, %c0_68] : memref<1x64xf32, #tpu.memory_space<vmem>>, vector<1x64xf32>
    %57 = vector.broadcast %56 : vector<1x64xf32> to vector<16x64xf32>
    %58 = arith.addf %55, %57 : vector<16x64xf32>
    %59 = vector.shape_cast %8 : vector<1x16x64xbf16> to vector<16x64xbf16>
    %60 = arith.extf %59 : vector<16x64xbf16> to vector<16x64xf32>
    %61 = arith.addf %58, %60 : vector<16x64xf32>
    %cst_69 = arith.constant 0.000000e+00 : f32
    %62 = vector.broadcast %cst_69 : f32 to vector<16x64xf32>
    %63 = arith.maximumf %61, %62 : vector<16x64xf32>
    %64 = vector.shape_cast %63 : vector<16x64xf32> to vector<1x16x64xf32>
    %c0_70 = arith.constant 0 : index
    %c0_71 = arith.constant 0 : index
    %c0_72 = arith.constant 0 : index
    %65 = vector.load %arg6[%c0_70, %c0_71, %c0_72] : memref<1x16x64xf32, #tpu.memory_space<vmem>>, vector<1x16x64xf32>
    tpu.vector_store %arg6[%c0_70, %c0_71, %c0_72], %64 {strides = array<i32>} : memref<1x16x64xf32, #tpu.memory_space<vmem>>, vector<1x16x64xf32>,
    return
  }
  func.func @transform_0(%arg0: i32) -> (i32, i32, i32) {
    %c0_i32 = arith.constant 0 : i32
    %c0_i32_0 = arith.constant 0 : i32
    %c0_i32_1 = arith.constant 0 : i32
    return %arg0, %c0_i32, %c0_i32_0 : i32, i32, i32
  }
  func.func @transform_1(%arg0: i32) -> (i32, i32, i32) {
    %c0_i32 = arith.constant 0 : i32
    %c0_i32_0 = arith.constant 0 : i32
    %c0_i32_1 = arith.constant 0 : i32
    %c0_i32_2 = arith.constant 0 : i32
    return %c0_i32, %c0_i32_0, %c0_i32_1 : i32, i32, i32
  }
  func.func @transform_2(%arg0: i32) -> (i32, i32, i32) {
    %c0_i32 = arith.constant 0 : i32
    %c0_i32_0 = arith.constant 0 : i32
    %c0_i32_1 = arith.constant 0 : i32
    %c0_i32_2 = arith.constant 0 : i32
    return %c0_i32, %c0_i32_0, %c0_i32_1 : i32, i32, i32
  }
  func.func @transform_3(%arg0: i32) -> (i32, i32) {
    %c0_i32 = arith.constant 0 : i32
    %c0_i32_0 = arith.constant 0 : i32
    %c0_i32_1 = arith.constant 0 : i32
    return %c0_i32, %c0_i32_0 : i32, i32
  }
  func.func @transform_4(%arg0: i32) -> (i32, i32) {
    %c0_i32 = arith.constant 0 : i32
    %c0_i32_0 = arith.constant 0 : i32
    %c0_i32_1 = arith.constant 0 : i32
    return %c0_i32, %c0_i32_0 : i32, i32
  }
  func.func @transform_5(%arg0: i32) -> (i32, i32, i32) {
    %c0_i32 = arith.constant 0 : i32
    %c0_i32_0 = arith.constant 0 : i32
    %c0_i32_1 = arith.constant 0 : i32
    return %arg0, %c0_i32, %c0_i32_0 : i32, i32, i32
  }
}

</mosaic_0001>

<llo_original>
// kernel: tpu_custom_call.1
$region0: #{tpu_custom_call.1}
  #allocation0 [shape = 'u32[]', space=smem, size = 0x4, offset = 0x4, fixed_abs, tag = 'smem constant byte address 0x4 - core index']
  #allocation1 [shape = 'u32[144,128]{1,0:T(1,128)}', space=vmem, size = 0x12000, scoped, tag = 'internal scratch']
  #allocation2 [shape = 'bf16[1,18,64]{2,1,0:T(8,128)(2,1)}', space=vmem, size = 0x1800, scoped, tag = 'scratch operand']
  #allocation3 [shape = 'bf16[1,18,64]{2,1,0:T(8,128)(2,1)}', space=vmem, size = 0x1800, scoped, tag = 'scratch operand']
  %s0 = inlined_call_operand.hbm [shape: bf16[2,16,64], index: 0, kind: input, shape index: {}]
  %s1 = inlined_call_operand.hbm [shape: bf16[3,64,64], index: 1, kind: input, shape index: {}]
  %s2 = inlined_call_operand.hbm [shape: bf16[3,64,64], index: 2, kind: input, shape index: {}]
  %s3 = inlined_call_operand.vmem [shape: f32[1,64], index: 3, kind: input, shape index: {}]
  %s4 = inlined_call_operand.vmem [shape: f32[1,64], index: 4, kind: input, shape index: {}]
  %s5 = inlined_call_operand.hbm [shape: f32[2,16,64], index: 5, kind: output, shape index: {}]
  %s6 = sld [smem:[#allocation0]]
  $region65: #{tpu_custom_call.1} parent=0
    _
  %s8 = ssub.s32 1, %s6
  %s9 = scalar_select 0, %s8, %s6
  $region1: #{tpu_custom_call.1} parent=0
    #allocation4 [shape = 'u8[8192]{0}', space=vmem, size = 0x2000, scoped, tag = 'input window, operand 0']
    #allocation5 [shape = 's32[2]{0}', space=sflag, size = 0x8, scoped, tag = 'scoped memory for tpu_custom_call.1']
    #allocation6 [shape = 's32[2]{0}', space=sflag, size = 0x8, scoped, tag = 'scoped memory for tpu_custom_call.1']
    #allocation7 [shape = 'u8[49152]{0}', space=vmem, size = 0xc000, scoped, tag = 'input window, operand 1, single buffered']
    #allocation8 [shape = 's32[1]{0}', space=sflag, size = 0x4, scoped, tag = 'scoped memory for tpu_custom_call.1']
    #allocation9 [shape = 'u8[49152]{0}', space=vmem, size = 0xc000, scoped, tag = 'input window, operand 2, single buffered']
    #allocation10 [shape = 'u8[16384]{0}', space=vmem, size = 0x4000, scoped, tag = 'output window, operand 0']
    %10 = vsyncpa [#allocation5], 0
    %s11 = scalar_lea.sflag [#allocation5], 1
    %12 = vsyncpa %s11, 0
    %13 = vsyncpa [#allocation8], 0
    %14 = vsyncpa [#allocation6], 0
    %s15 = scalar_lea.sflag [#allocation6], 1
    %16 = vsyncpa %s15, 0
    loop: start=0, step=1, limit=4
    $region2: #{tpu_custom_call.1} parent=1 // loop_pre_header
      _
    $region3: #{tpu_custom_call.1} parent=1 // loop_header
      %s18 = sphi 0, %s22
      %p19 = scmp.ge.s32.totalorder %s18, 4
      %s28 = sphi 0, %s30
      %s31 = sphi 0, %s28
      %s32 = sphi 0, %s31
      %s48 = sphi 0, %s32
      %s52 = sphi 0, %s52
      %s54 = sphi 0, %s52
      %s55 = sphi 0, %s54
      %s69 = sphi 0, %s55
      %s73 = sphi 0, %s73
      %s75 = sphi 0, %s73
      %s76 = sphi 0, %s75
      %s90 = sphi 0, %s76
      %s94 = sphi 0, %s94
      %s96 = sphi 0, %s94
      %s97 = sphi 0, %s96
      %s111 = sphi 0, %s97
      %s115 = sphi 0, %s115
      %s117 = sphi 0, %s115
      %s118 = sphi 0, %s117
      %s132 = sphi 0, %s118
      %s138 = sphi 0, %s140
      %s141 = sphi 0, %s138
      %s142 = sphi 0, %s141
      %s158 = sphi 0, %s142
    $region4: #{tpu_custom_call.1} parent=1 // loop_header_branch
      %21 = sbr.rel (%p19) target = $region8
    $region5: #{tpu_custom_call.1} parent=1 // loop_body
      %s23 = ssub.s32 %s18, 1
      %s24 = ssub.s32 %s18, 2
      %s25 = sadd.s32 %s18, 1
      %s26 = ssub.s32 %s18, %s25
      %p27 = scmp.eq.s32.totalorder %s26, 0
      %s29 = sadd.s32 %s28, 1
      %s30 = scalar_select %p27, %s28, %s29
      %p33 = pneg %p27
      %p34 = scmp.eq.s32.totalorder %s18, 1
      %p35 = por %p33, %p34
      %p36 = scmp.ne.s32.totalorder %s28, %s31
      %p37 = scmp.eq.s32.totalorder %s18, 0
      %p38 = por %p36, %p37
      %p39 = scmp.ne.s32.totalorder %s28, %s31
      %p40 = scmp.eq.s32.totalorder %s23, 1
      %p41 = por %p39, %p40
      %p42 = scmp.ne.s32.totalorder %s31, %s32
      %p43 = scmp.eq.s32.totalorder %s23, 0
      %p44 = por %p42, %p43
      %p45 = scmp.ne.s32.totalorder %s31, %s32
      %p46 = scmp.eq.s32.totalorder %s24, 1
      %p47 = por %p45, %p46
      %p49 = scmp.ne.s32.totalorder %s32, %s48
      %p50 = scmp.eq.s32.totalorder %s24, 0
      %p51 = por %p49, %p50
      %s53 = sadd.s32 %s52, 1
      %p56 = scmp.eq.s32.totalorder %s18, 1
      %p57 = scmp.ne.s32.totalorder %s52, %s54
      %p58 = scmp.eq.s32.totalorder %s18, 0
      %p59 = por %p57, %p58
      %p60 = scmp.ne.s32.totalorder %s52, %s54
      %p61 = scmp.eq.s32.totalorder %s23, 1
      %p62 = por %p60, %p61
      %p63 = scmp.ne.s32.totalorder %s54, %s55
      %p64 = scmp.eq.s32.totalorder %s23, 0
      %p65 = por %p63, %p64
      %p66 = scmp.ne.s32.totalorder %s54, %s55
      %p67 = scmp.eq.s32.totalorder %s24, 1
      %p68 = por %p66, %p67
      %p70 = scmp.ne.s32.totalorder %s55, %s69
      %p71 = scmp.eq.s32.totalorder %s24, 0
      %p72 = por %p70, %p71
      %s74 = sadd.s32 %s73, 1
      %p77 = scmp.eq.s32.totalorder %s18, 1
      %p78 = scmp.ne.s32.totalorder %s73, %s75
      %p79 = scmp.eq.s32.totalorder %s18, 0
      %p80 = por %p78, %p79
      %p81 = scmp.ne.s32.totalorder %s73, %s75
      %p82 = scmp.eq.s32.totalorder %s23, 1
      %p83 = por %p81, %p82
      %p84 = scmp.ne.s32.totalorder %s75, %s76
      %p85 = scmp.eq.s32.totalorder %s23, 0
      %p86 = por %p84, %p85
      %p87 = scmp.ne.s32.totalorder %s75, %s76
      %p88 = scmp.eq.s32.totalorder %s24, 1
      %p89 = por %p87, %p88
      %p91 = scmp.ne.s32.totalorder %s76, %s90
      %p92 = scmp.eq.s32.totalorder %s24, 0
      %p93 = por %p91, %p92
      %s95 = sadd.s32 %s94, 1
      %p98 = scmp.eq.s32.totalorder %s18, 1
      %p99 = scmp.ne.s32.totalorder %s94, %s96
      %p100 = scmp.eq.s32.totalorder %s18, 0
      %p101 = por %p99, %p100
      %p102 = scmp.ne.s32.totalorder %s94, %s96
      %p103 = scmp.eq.s32.totalorder %s23, 1
      %p104 = por %p102, %p103
      %p105 = scmp.ne.s32.totalorder %s96, %s97
      %p106 = scmp.eq.s32.totalorder %s23, 0
      %p107 = por %p105, %p106
      %p108 = scmp.ne.s32.totalorder %s96, %s97
      %p109 = scmp.eq.s32.totalorder %s24, 1
      %p110 = por %p108, %p109
      %p112 = scmp.ne.s32.totalorder %s97, %s111
      %p113 = scmp.eq.s32.totalorder %s24, 0
      %p114 = por %p112, %p113
      %s116 = sadd.s32 %s115, 1
      %p119 = scmp.eq.s32.totalorder %s18, 1
      %p120 = scmp.ne.s32.totalorder %s115, %s117
      %p121 = scmp.eq.s32.totalorder %s18, 0
      %p122 = por %p120, %p121
      %p123 = scmp.ne.s32.totalorder %s115, %s117
      %p124 = scmp.eq.s32.totalorder %s23, 1
      %p125 = por %p123, %p124
      %p126 = scmp.ne.s32.totalorder %s117, %s118
      %p127 = scmp.eq.s32.totalorder %s23, 0
      %p128 = por %p126, %p127
      %p129 = scmp.ne.s32.totalorder %s117, %s118
      %p130 = scmp.eq.s32.totalorder %s24, 1
      %p131 = por %p129, %p130
      %p133 = scmp.ne.s32.totalorder %s118, %s132
      %p134 = scmp.eq.s32.totalorder %s24, 0
      %p135 = por %p133, %p134
      %s136 = ssub.s32 %s18, %s25
      %p137 = scmp.eq.s32.totalorder %s136, 0
      %s139 = sadd.s32 %s138, 1
      %s140 = scalar_select %p137, %s138, %s139
      %p143 = pneg %p137
      %p144 = scmp.eq.s32.totalorder %s18, 1
      %p145 = por %p143, %p144
      %p146 = scmp.ne.s32.totalorder %s138, %s141
      %p147 = scmp.eq.s32.totalorder %s18, 0
      %p148 = por %p146, %p147
      %p149 = scmp.ne.s32.totalorder %s138, %s141
      %p150 = scmp.eq.s32.totalorder %s23, 1
      %p151 = por %p149, %p150
      %p152 = scmp.ne.s32.totalorder %s141, %s142
      %p153 = scmp.eq.s32.totalorder %s23, 0
      %p154 = por %p152, %p153
      %p155 = scmp.ne.s32.totalorder %s141, %s142
      %p156 = scmp.eq.s32.totalorder %s24, 1
      %p157 = por %p155, %p156
      %p159 = scmp.ne.s32.totalorder %s142, %s158
      %p160 = scmp.eq.s32.totalorder %s24, 0
      %p161 = por %p159, %p160
      %p162 = scmp.le.s32.totalorder 1, %s18
      %p163 = scmp.lt.s32.totalorder %s18, 3
      %p164 = pnand %p162, %p163
      %p165 = pneg %p164
      // Predicated region
      $region9: #{tpu_custom_call.1} parent=5 // pred_check
        _
      $region10: #{tpu_custom_call.1} parent=5 // pred_check_branch
        %167 = sbr.rel (%p164) target = $region12
      $region11: #{tpu_custom_call.1} parent=5 // pred_region
        %s168 = ssub.s32 %s18, 1
        // Predicated region
        $region13: #{tpu_custom_call.1} parent=11 // pred_check
          %p169 = pneg %p65
        $region14: #{tpu_custom_call.1} parent=11 // pred_check_branch
          %171 = sbr.rel (%p169) target = $region16
        $region15: #{tpu_custom_call.1} parent=11 // pred_region
          %s173 = ssub.s32 1536, 1536
          %174 = vsyncadd [#allocation8], %s173
          %s175 = sshll.u32 [#allocation7], 4
          %s176 = int_to_ptr.vmem [resolvable:$true] %s175
          %181 = dma.hbm_to_vmem [thread:$0]  %s1, 1536, %s176, [#allocation8], 64, 64, 4
        $region16: #{tpu_custom_call.1} parent=11 // pred_fallthru
          _
        // Predicated region
        $region17: #{tpu_custom_call.1} parent=11 // pred_check
          %p182 = pneg %p86
        $region18: #{tpu_custom_call.1} parent=11 // pred_check_branch
          %184 = sbr.rel (%p182) target = $region20
        $region19: #{tpu_custom_call.1} parent=11 // pred_region
          %s186 = ssub.s32 1536, 1536
          %187 = vsyncadd [#allocation8], %s186
          %s188 = sshll.u32 [#allocation9], 4
          %s189 = int_to_ptr.vmem [resolvable:$true] %s188
          %194 = dma.hbm_to_vmem [thread:$0]  %s2, 1536, %s189, [#allocation8], 64, 64, 4
        $region20: #{tpu_custom_call.1} parent=11 // pred_fallthru
          _
        // Predicated region
        $region21: #{tpu_custom_call.1} parent=11 // pred_check
          %p195 = pneg %p107
        $region22: #{tpu_custom_call.1} parent=11 // pred_check_branch
          %197 = sbr.rel (%p195) target = $region24
        $region23: #{tpu_custom_call.1} parent=11 // pred_region
          _
        $region24: #{tpu_custom_call.1} parent=11 // pred_fallthru
          _
        // Predicated region
        $region25: #{tpu_custom_call.1} parent=11 // pred_check
          %p198 = pneg %p128
        $region26: #{tpu_custom_call.1} parent=11 // pred_check_branch
          %200 = sbr.rel (%p198) target = $region28
        $region27: #{tpu_custom_call.1} parent=11 // pred_region
          _
        $region28: #{tpu_custom_call.1} parent=11 // pred_fallthru
          _
      $region12: #{tpu_custom_call.1} parent=5 // pred_fallthru
        _
      %p201 = scmp.lt.s32.totalorder %s18, 2
      // Predicated region
      $region29: #{tpu_custom_call.1} parent=5 // pred_check
        %p202 = pneg %p201
      $region30: #{tpu_custom_call.1} parent=5 // pred_check_branch
        %204 = sbr.rel (%p202) target = $region32
      $region31: #{tpu_custom_call.1} parent=5 // pred_region
        // Predicated region
        $region33: #{tpu_custom_call.1} parent=31 // pred_check
          %p205 = pneg %p38
        $region34: #{tpu_custom_call.1} parent=31 // pred_check_branch
          %207 = sbr.rel (%p205) target = $region36
        $region35: #{tpu_custom_call.1} parent=31 // pred_region
          %s208 = sand.u32 %s28, 1
          %s209 = scalar_lea.sflag [#allocation5], %s208
          %s210 = sand.u32 %s28, 1
          %s211 = smul.addr %s210, 8
          %s212 = scalar_lea.vmem [#allocation4], %s211
          %s214 = ssub.s32 128, 128
          %215 = vsyncadd %s209, %s214
          %s216 = smul.addr %s18, 2
          %s217 = smul.addr %s216, 64
          %s218 = scalar_lea.hbm %s0, %s217
          %s219 = sshll.u32 %s212, 4
          %s220 = int_to_ptr.vmem [resolvable:$true] %s219
          %225 = dma.hbm_to_vmem [thread:$0]  %s218, 128, %s220, %s209, 64, 64, 4
        $region36: #{tpu_custom_call.1} parent=31 // pred_fallthru
          _
      $region32: #{tpu_custom_call.1} parent=5 // pred_fallthru
        _
      %p226 = scmp.le.s32.totalorder 1, %s18
      %p227 = scmp.lt.s32.totalorder %s18, 3
      %p228 = pnand %p226, %p227
      %p229 = pneg %p228
      // Predicated region
      $region37: #{tpu_custom_call.1} parent=5 // pred_check
        _
      $region38: #{tpu_custom_call.1} parent=5 // pred_check_branch
        %231 = sbr.rel (%p228) target = $region40
      $region39: #{tpu_custom_call.1} parent=5 // pred_region
        %s232 = ssub.s32 %s18, 1
        %s233 = sand.u32 %s31, 1
        %s234 = scalar_lea.sflag [#allocation5], %s233
        %s235 = sand.u32 %s31, 1
        %s236 = smul.addr %s235, 8
        %s237 = scalar_lea.vmem [#allocation4], %s236
        // Predicated region
        $region41: #{tpu_custom_call.1} parent=39 // pred_check
          %p238 = pneg %p44
        $region42: #{tpu_custom_call.1} parent=39 // pred_check_branch
          %240 = sbr.rel (%p238) target = $region44
        $region43: #{tpu_custom_call.1} parent=39 // pred_region
          %241 = dma.done %s234, 128
        $region44: #{tpu_custom_call.1} parent=39 // pred_fallthru
          _
        // Predicated region
        $region45: #{tpu_custom_call.1} parent=39 // pred_check
          %p242 = pneg %p65
        $region46: #{tpu_custom_call.1} parent=39 // pred_check_branch
          %244 = sbr.rel (%p242) target = $region48
        $region47: #{tpu_custom_call.1} parent=39 // pred_region
          %245 = dma.done [#allocation8], 1536
        $region48: #{tpu_custom_call.1} parent=39 // pred_fallthru
          _
        // Predicated region
        $region49: #{tpu_custom_call.1} parent=39 // pred_check
          %p246 = pneg %p86
        $region50: #{tpu_custom_call.1} parent=39 // pred_check_branch
          %248 = sbr.rel (%p246) target = $region52
        $region51: #{tpu_custom_call.1} parent=39 // pred_region
          %249 = dma.done [#allocation8], 1536
        $region52: #{tpu_custom_call.1} parent=39 // pred_fallthru
          _
        %s250 = sand.u32 %s31, 1
        %s251 = scalar_lea.sflag [#allocation5], %s250
        %s252 = sand.u32 %s31, 1
        %s253 = smul.addr %s252, 8
        %s254 = scalar_lea.vmem [#allocation4], %s253
        %p255 = pneg %p44
        %p256 = pneg %p41
        %p257 = pneg %p65
        %p258 = pneg %p62
        %p259 = pneg %p86
        %p260 = pneg %p83
        %p261 = pneg %p107
        %p262 = pneg %p104
        %p263 = pneg %p128
        %p264 = pneg %p125
        %p265 = pneg %p154
        %p266 = pneg %p151
        %s267 = sand.u32 %s141, 1
        %s268 = scalar_lea.sflag [#allocation6], %s267
        %s269 = sand.u32 %s141, 1
        %s270 = smul.addr %s269, 16
        %s271 = scalar_lea.vmem [#allocation10], %s270
        %vm273 = vcmask 516096
        %vm274 = vsmask.f32 256
        %vm275 = vmand %vm273, %vm274
        %v276 = vld [vmem:[#allocation2] sm:$0x1]
        %v277 = vsel %vm275, 0, %v276
        %278 = vst [vmem:[#allocation2] sm:$0x1] %v277
        %vm279 = vsmask.f32 7938
        %vm280 = vmand %vm273, %vm279
        %v281 = vld [vmem:[#allocation2 + $0x8] sm:$0x1]
        %v282 = vsel %vm280, 0, %v281
        %283 = vst [vmem:[#allocation2 + $0x8] sm:$0x1] %v282
        %v284 = vld [vmem:[#allocation3] sm:$0x1]
        %v285 = vsel %vm275, 0, %v284
        %286 = vst [vmem:[#allocation3] sm:$0x1] %v285
        %v287 = vld [vmem:[#allocation3 + $0x8] sm:$0x1]
        %v288 = vsel %vm280, 0, %v287
        %289 = vst [vmem:[#allocation3 + $0x8] sm:$0x1] %v288
        %v290 = vld [vmem:[%s237] sm:$0xf]
        %v291 = vld [vmem:[%s237 + $0x4] sm:$0xf]
        %vm292 = vsmask.f32 4368
        %vm293 = vmor %vm274, %vm292
        %v295 = vshrl.u32 %v290, 16
        %v297 = vrot.slane %v295, 7
        %v298 = vshll.u32 %v290, 16
        %v300 = vor.u32 %v297, %v298
        %v301 = vrot.slane %v297, 4
        %v303 = vshrl.u32 %v291, 16
        %v305 = vrot.slane %v303, 7
        %v306 = vshll.u32 %v291, 16
        %v308 = vor.u32 %v305, %v306
        %v309 = vsel %vm293, %v301, %v308
        %v310 = vrot.slane %v305, 4
        %vm314 = vcmask 519168
        %vm315 = vmand %vm314, %vm279
        %v316 = vld [vmem:[#allocation2] sm:$0xf]
        %v317 = vsel %vm315, %v300, %v316
        %318 = vst [vmem:[#allocation2] sm:$0xf] %v317
        %vm319 = vcmask 519168
        %320 = vst.msk [vmem:[#allocation2 + $0x4] sm:$0xf] %vm319, %v309
        %v321 = vld [vmem:[#allocation2 + $0x8] sm:$0x1]
        %v322 = vsel %vm275, %v310, %v321
        %323 = vst [vmem:[#allocation2 + $0x8] sm:$0x1] %v322
        %v324 = vld [vmem:[#allocation2] sm:$0xf]
        %v325 = vld [vmem:[#allocation2 + $0x4] sm:$0xf]
        %v326 = vld [vmem:[#allocation7] sm:$0xf]
        %v327 = vld [vmem:[#allocation7 + $0x4] sm:$0xf]
        %v328 = vld [vmem:[#allocation7 + $0x8] sm:$0xf]
        %v329 = vld [vmem:[#allocation7 + $0xc] sm:$0xf]
        %v330 = vld [vmem:[#allocation7 + $0x10] sm:$0xf]
        %v331 = vld [vmem:[#allocation7 + $0x14] sm:$0xf]
        %v332 = vld [vmem:[#allocation7 + $0x18] sm:$0xf]
        %v333 = vld [vmem:[#allocation7 + $0x1c] sm:$0xf]
        %v334 = vld [vmem:[#allocation2 + $0x8] sm:$0x1]
        %s335 = scalar_lea.vmem [#allocation7], 32
        %v336 = vld [vmem:[%s335] sm:$0xf]
        %v337 = vld [vmem:[%s335 + $0x4] sm:$0xf]
        %v338 = vld [vmem:[%s335 + $0x8] sm:$0xf]
        %v339 = vld [vmem:[%s335 + $0xc] sm:$0xf]
        %v340 = vld [vmem:[%s335 + $0x10] sm:$0xf]
        %v341 = vld [vmem:[%s335 + $0x14] sm:$0xf]
        %v342 = vld [vmem:[%s335 + $0x18] sm:$0xf]
        %v343 = vld [vmem:[%s335 + $0x1c] sm:$0xf]
        %v347 = vunpack.c.l.b16 %v324
        %v348 = vunpack.c.l.b16 %v325
        %v349 = vunpack.c.l.b16 %v334
        %v350 = vpack.c.b16 %v348, %v347
        %v351 = vpack.c.b16 %v349, %v349
        %vm352 = vsmask.f32 7424
        %v354 = vshrl.u32 %v350, 16
        %v356 = vshll.u32 %v350, 16
        %v358 = vrot.slane %v356, 1
        %v359 = vor.u32 %v354, %v358
        %v361 = vshll.u32 %v351, 16
        %v363 = vrot.slane %v361, 1
        %v364 = vsel %vm352, %v359, %v363
        %v373 = vunpack.c.l.b16 %v336
        %v374 = vunpack.c.l.b16 %v337
        %v375 = vunpack.c.l.b16 %v338
        %v376 = vunpack.c.l.b16 %v339
        %v377 = vunpack.c.l.b16 %v340
        %v378 = vunpack.c.l.b16 %v341
        %v379 = vunpack.c.l.b16 %v342
        %v380 = vunpack.c.l.b16 %v343
        %v381 = vpack.c.b16 %v374, %v373
        %v382 = vpack.c.b16 %v376, %v375
        %v383 = vpack.c.b16 %v378, %v377
        %v384 = vpack.c.b16 %v380, %v379
        %vm389 = vcmask 523264
        %v391 = vsel %vm389, %v364, 0
        %393 = vmatprep.subr.bf16.mxu0 0
        %394 = vmatpush1.bf16.msra.mxu0 %v381
        %395 = vmatprep.subr.bf16.mxu0 0
        %396 = vmatpush1.bf16.msra.mxu0 %v382
        %397 = vmatprep.subr.bf16.mxu0 0
        %398 = vmatpush1.bf16.msra.mxu0 %v383
        %399 = vmatprep.subr.bf16.mxu0 0
        %400 = vmatpush1.bf16.msra.mxu0 %v384
        %401 = vmatprep.subr.bf16.mxu0 0
        %402 = vmatpush1.bf16.msra.mxu0 0
        %403 = vmatprep.subr.bf16.mxu0 0
        %404 = vmatpush1.bf16.msra.mxu0 0
        %405 = vmatprep.subr.bf16.mxu0 0
        %406 = vmatpush1.bf16.msra.mxu0 0
        %407 = vmatprep.subr.bf16.mxu0 0
        %408 = vmatpush1.bf16.msra.mxu0 0
        %409 = vmatprep.subr.bf16.mxu0 0
        %410 = vmatpush1.bf16.msra.mxu0 0
        %411 = vmatprep.subr.bf16.mxu0 0
        %412 = vmatpush1.bf16.msra.mxu0 0
        %413 = vmatprep.subr.bf16.mxu0 0
        %414 = vmatpush1.bf16.msra.mxu0 0
        %415 = vmatprep.subr.bf16.mxu0 0
        %416 = vmatpush1.bf16.msra.mxu0 0
        %417 = vmatprep.subr.bf16.mxu0 0
        %418 = vmatpush1.bf16.msra.mxu0 0
        %419 = vmatprep.subr.bf16.mxu0 0
        %420 = vmatpush1.bf16.msra.mxu0 0
        %421 = vmatprep.subr.bf16.mxu0 0
        %422 = vmatpush1.bf16.msra.mxu0 0
        %423 = vmatprep.subr.bf16.mxu0 0
        %424 = vmatpush1.bf16.msra.mxu0 0
        %425 = vmatprep.mubr.bf16.mxu0 0
        %426 = vmatmul.mubr.bf16.gmra.mrb[0].mxu0 %v391
        %v427 = vpop.f32.mrb[0].mxu0
        %v428 = vadd.f32 0.0, %v427
        %v429 = vpop.f32.mrb[0].mxu0
        %v430 = vpop.f32.mrb[0].mxu0
        %v431 = vadd.f32 0.0, %v430
        %v432 = vpop.f32.mrb[0].mxu0
        %433 = vdwg.mxu0
        %v442 = vunpack.c.l.b16 %v326
        %v443 = vunpack.c.l.b16 %v327
        %v444 = vunpack.c.l.b16 %v328
        %v445 = vunpack.c.l.b16 %v329
        %v446 = vunpack.c.l.b16 %v330
        %v447 = vunpack.c.l.b16 %v331
        %v448 = vunpack.c.l.b16 %v332
        %v449 = vunpack.c.l.b16 %v333
        %v450 = vpack.c.b16 %v443, %v442
        %v451 = vpack.c.b16 %v445, %v444
        %v452 = vpack.c.b16 %v447, %v446
        %v453 = vpack.c.b16 %v449, %v448
        %v458 = vsel %vm389, %v350, 0
        %460 = vmatprep.subr.bf16.mxu0 0
        %461 = vmatpush1.bf16.msra.mxu0 %v450
        %462 = vmatprep.subr.bf16.mxu0 0
        %463 = vmatpush1.bf16.msra.mxu0 %v451
        %464 = vmatprep.subr.bf16.mxu0 0
        %465 = vmatpush1.bf16.msra.mxu0 %v452
        %466 = vmatprep.subr.bf16.mxu0 0
        %467 = vmatpush1.bf16.msra.mxu0 %v453
        %468 = vmatprep.subr.bf16.mxu0 0
        %469 = vmatpush1.bf16.msra.mxu0 0
        %470 = vmatprep.subr.bf16.mxu0 0
        %471 = vmatpush1.bf16.msra.mxu0 0
        %472 = vmatprep.subr.bf16.mxu0 0
        %473 = vmatpush1.bf16.msra.mxu0 0
        %474 = vmatprep.subr.bf16.mxu0 0
        %475 = vmatpush1.bf16.msra.mxu0 0
        %476 = vmatprep.subr.bf16.mxu0 0
        %477 = vmatpush1.bf16.msra.mxu0 0
        %478 = vmatprep.subr.bf16.mxu0 0
        %479 = vmatpush1.bf16.msra.mxu0 0
        %480 = vmatprep.subr.bf16.mxu0 0
        %481 = vmatpush1.bf16.msra.mxu0 0
        %482 = vmatprep.subr.bf16.mxu0 0
        %483 = vmatpush1.bf16.msra.mxu0 0
        %484 = vmatprep.subr.bf16.mxu0 0
        %485 = vmatpush1.bf16.msra.mxu0 0
        %486 = vmatprep.subr.bf16.mxu0 0
        %487 = vmatpush1.bf16.msra.mxu0 0
        %488 = vmatprep.subr.bf16.mxu0 0
        %489 = vmatpush1.bf16.msra.mxu0 0
        %490 = vmatprep.subr.bf16.mxu0 0
        %491 = vmatpush1.bf16.msra.mxu0 0
        %492 = vmatprep.mubr.bf16.mxu0 0
        %493 = vmatmul.mubr.bf16.gmra.mrb[0].mxu0 %v458
        %v494 = vpop.f32.mrb[0].mxu0
        %v495 = vadd.f32 %v428, %v494
        %v496 = vpop.f32.mrb[0].mxu0
        %v497 = vpop.f32.mrb[0].mxu0
        %v498 = vadd.f32 %v431, %v497
        %v499 = vpop.f32.mrb[0].mxu0
        %500 = vdwg.mxu0
        %v501 = vld [vmem:[#allocation2] sm:$0xe]
        %s502 = scalar_lea.vmem [#allocation7], 64
        %v503 = vld [vmem:[%s502] sm:$0xf]
        %v504 = vld [vmem:[%s502 + $0x4] sm:$0xf]
        %v505 = vld [vmem:[%s502 + $0x8] sm:$0xf]
        %v506 = vld [vmem:[%s502 + $0xc] sm:$0xf]
        %v507 = vld [vmem:[%s502 + $0x10] sm:$0xf]
        %v508 = vld [vmem:[%s502 + $0x14] sm:$0xf]
        %v509 = vld [vmem:[%s502 + $0x18] sm:$0xf]
        %v510 = vld [vmem:[%s502 + $0x1c] sm:$0xf]
        %v512 = vunpack.c.l.b16 %v501
        %v513 = vpack.c.b16 %v348, %v512
        %vm514 = vcmask 1046528
        %v515 = vrot.slane %v513, 1
        %v516 = vrot.slane %v351, 1
        %v517 = vsel %vm514, %v515, %v516
        %v526 = vunpack.c.l.b16 %v503
        %v527 = vunpack.c.l.b16 %v504
        %v528 = vunpack.c.l.b16 %v505
        %v529 = vunpack.c.l.b16 %v506
        %v530 = vunpack.c.l.b16 %v507
        %v531 = vunpack.c.l.b16 %v508
        %v532 = vunpack.c.l.b16 %v509
        %v533 = vunpack.c.l.b16 %v510
        %v534 = vpack.c.b16 %v527, %v526
        %v535 = vpack.c.b16 %v529, %v528
        %v536 = vpack.c.b16 %v531, %v530
        %v537 = vpack.c.b16 %v533, %v532
        %v543 = vsel %vm389, %v517, 0
        %545 = vmatprep.subr.bf16.mxu0 0
        %546 = vmatpush1.bf16.msra.mxu0 %v534
        %547 = vmatprep.subr.bf16.mxu0 0
        %548 = vmatpush1.bf16.msra.mxu0 %v535
        %549 = vmatprep.subr.bf16.mxu0 0
        %550 = vmatpush1.bf16.msra.mxu0 %v536
        %551 = vmatprep.subr.bf16.mxu0 0
        %552 = vmatpush1.bf16.msra.mxu0 %v537
        %553 = vmatprep.subr.bf16.mxu0 0
        %554 = vmatpush1.bf16.msra.mxu0 0
        %555 = vmatprep.subr.bf16.mxu0 0
        %556 = vmatpush1.bf16.msra.mxu0 0
        %557 = vmatprep.subr.bf16.mxu0 0
        %558 = vmatpush1.bf16.msra.mxu0 0
        %559 = vmatprep.subr.bf16.mxu0 0
        %560 = vmatpush1.bf16.msra.mxu0 0
        %561 = vmatprep.subr.bf16.mxu0 0
        %562 = vmatpush1.bf16.msra.mxu0 0
        %563 = vmatprep.subr.bf16.mxu0 0
        %564 = vmatpush1.bf16.msra.mxu0 0
        %565 = vmatprep.subr.bf16.mxu0 0
        %566 = vmatpush1.bf16.msra.mxu0 0
        %567 = vmatprep.subr.bf16.mxu0 0
        %568 = vmatpush1.bf16.msra.mxu0 0
        %569 = vmatprep.subr.bf16.mxu0 0
        %570 = vmatpush1.bf16.msra.mxu0 0
        %571 = vmatprep.subr.bf16.mxu0 0
        %572 = vmatpush1.bf16.msra.mxu0 0
        %573 = vmatprep.subr.bf16.mxu0 0
        %574 = vmatpush1.bf16.msra.mxu0 0
        %575 = vmatprep.subr.bf16.mxu0 0
        %576 = vmatpush1.bf16.msra.mxu0 0
        %577 = vmatprep.mubr.bf16.mxu0 0
        %578 = vmatmul.mubr.bf16.gmra.mrb[0].mxu0 %v543
        %v579 = vpop.f32.mrb[0].mxu0
        %v580 = vadd.f32 0.0, %v579
        %v581 = vpop.f32.mrb[0].mxu0
        %v582 = vpop.f32.mrb[0].mxu0
        %v583 = vadd.f32 0.0, %v582
        %v584 = vpop.f32.mrb[0].mxu0
        %585 = vdwg.mxu0
        %v586 = vadd.f32 %v495, %v580
        %v587 = vadd.f32 %v498, %v583
        %v588 = vld [vmem:[%s3] sm:$0x1]
        %v590 = vlaneseq
        %v591 = vshrl.u32 %v590, 7
        %v592 = vsub.s32 0, %v591
        %v593 = vrot.slane %v588, %v592
        %v595 = vadd.f32 %v586, %v593
        %v596 = vadd.f32 %v587, %v593
        %v597 = vmax.f32 %v595, 0.0
        %v598 = vmax.f32 %v596, 0.0
        %v599 = vpack.c.bf16 %v598, %v597
        %v601 = vunpack.c.l.b16 %v599
        %v602 = vunpack.c.h.b16 %v599
        %v603 = vpack.c.b16 %v601, %v601
        %v604 = vpack.c.b16 %v602, %v602
        %v606 = vshrl.u32 %v603, 16
        %v608 = vrot.slane %v606, 7
        %v609 = vshll.u32 %v603, 16
        %v611 = vor.u32 %v608, %v609
        %v612 = vrot.slane %v608, 4
        %v614 = vshrl.u32 %v604, 16
        %v616 = vrot.slane %v614, 7
        %v617 = vshll.u32 %v604, 16
        %v619 = vor.u32 %v616, %v617
        %v620 = vsel %vm293, %v612, %v619
        %v621 = vrot.slane %v616, 4
        %v625 = vld [vmem:[#allocation3] sm:$0xf]
        %v626 = vsel %vm315, %v611, %v625
        %627 = vst [vmem:[#allocation3] sm:$0xf] %v626
        %628 = vst.msk [vmem:[#allocation3 + $0x4] sm:$0xf] %vm319, %v620
        %v629 = vld [vmem:[#allocation3 + $0x8] sm:$0x1]
        %v630 = vsel %vm275, %v621, %v629
        %631 = vst [vmem:[#allocation3 + $0x8] sm:$0x1] %v630
        %v632 = vld [vmem:[#allocation3] sm:$0xf]
        %v633 = vld [vmem:[#allocation3 + $0x4] sm:$0xf]
        %v634 = vld [vmem:[#allocation9] sm:$0xf]
        %v635 = vld [vmem:[#allocation9 + $0x4] sm:$0xf]
        %v636 = vld [vmem:[#allocation9 + $0x8] sm:$0xf]
        %v637 = vld [vmem:[#allocation9 + $0xc] sm:$0xf]
        %v638 = vld [vmem:[#allocation9 + $0x10] sm:$0xf]
        %v639 = vld [vmem:[#allocation9 + $0x14] sm:$0xf]
        %v640 = vld [vmem:[#allocation9 + $0x18] sm:$0xf]
        %v641 = vld [vmem:[#allocation9 + $0x1c] sm:$0xf]
        %v642 = vld [vmem:[#allocation3 + $0x8] sm:$0x1]
        %s643 = scalar_lea.vmem [#allocation9], 32
        %v644 = vld [vmem:[%s643] sm:$0xf]
        %v645 = vld [vmem:[%s643 + $0x4] sm:$0xf]
        %v646 = vld [vmem:[%s643 + $0x8] sm:$0xf]
        %v647 = vld [vmem:[%s643 + $0xc] sm:$0xf]
        %v648 = vld [vmem:[%s643 + $0x10] sm:$0xf]
        %v649 = vld [vmem:[%s643 + $0x14] sm:$0xf]
        %v650 = vld [vmem:[%s643 + $0x18] sm:$0xf]
        %v651 = vld [vmem:[%s643 + $0x1c] sm:$0xf]
        %v655 = vunpack.c.l.b16 %v632
        %v656 = vunpack.c.l.b16 %v633
        %v657 = vunpack.c.l.b16 %v642
        %v658 = vpack.c.b16 %v656, %v655
        %v659 = vpack.c.b16 %v657, %v657
        %v661 = vshrl.u32 %v658, 16
        %v663 = vshll.u32 %v658, 16
        %v665 = vrot.slane %v663, 1
        %v666 = vor.u32 %v661, %v665
        %v668 = vshll.u32 %v659, 16
        %v670 = vrot.slane %v668, 1
        %v671 = vsel %vm352, %v666, %v670
        %v680 = vunpack.c.l.b16 %v644
        %v681 = vunpack.c.l.b16 %v645
        %v682 = vunpack.c.l.b16 %v646
        %v683 = vunpack.c.l.b16 %v647
        %v684 = vunpack.c.l.b16 %v648
        %v685 = vunpack.c.l.b16 %v649
        %v686 = vunpack.c.l.b16 %v650
        %v687 = vunpack.c.l.b16 %v651
        %v688 = vpack.c.b16 %v681, %v680
        %v689 = vpack.c.b16 %v683, %v682
        %v690 = vpack.c.b16 %v685, %v684
        %v691 = vpack.c.b16 %v687, %v686
        %v697 = vsel %vm389, %v671, 0
        %699 = vmatprep.subr.bf16.mxu0 0
        %700 = vmatpush1.bf16.msra.mxu0 %v688
        %701 = vmatprep.subr.bf16.mxu0 0
        %702 = vmatpush1.bf16.msra.mxu0 %v689
        %703 = vmatprep.subr.bf16.mxu0 0
        %704 = vmatpush1.bf16.msra.mxu0 %v690
        %705 = vmatprep.subr.bf16.mxu0 0
        %706 = vmatpush1.bf16.msra.mxu0 %v691
        %707 = vmatprep.subr.bf16.mxu0 0
        %708 = vmatpush1.bf16.msra.mxu0 0
        %709 = vmatprep.subr.bf16.mxu0 0
        %710 = vmatpush1.bf16.msra.mxu0 0
        %711 = vmatprep.subr.bf16.mxu0 0
        %712 = vmatpush1.bf16.msra.mxu0 0
        %713 = vmatprep.subr.bf16.mxu0 0
        %714 = vmatpush1.bf16.msra.mxu0 0
        %715 = vmatprep.subr.bf16.mxu0 0
        %716 = vmatpush1.bf16.msra.mxu0 0
        %717 = vmatprep.subr.bf16.mxu0 0
        %718 = vmatpush1.bf16.msra.mxu0 0
        %719 = vmatprep.subr.bf16.mxu0 0
        %720 = vmatpush1.bf16.msra.mxu0 0
        %721 = vmatprep.subr.bf16.mxu0 0
        %722 = vmatpush1.bf16.msra.mxu0 0
        %723 = vmatprep.subr.bf16.mxu0 0
        %724 = vmatpush1.bf16.msra.mxu0 0
        %725 = vmatprep.subr.bf16.mxu0 0
        %726 = vmatpush1.bf16.msra.mxu0 0
        %727 = vmatprep.subr.bf16.mxu0 0
        %728 = vmatpush1.bf16.msra.mxu0 0
        %729 = vmatprep.subr.bf16.mxu0 0
        %730 = vmatpush1.bf16.msra.mxu0 0
        %731 = vmatprep.mubr.bf16.mxu0 0
        %732 = vmatmul.mubr.bf16.gmra.mrb[0].mxu0 %v697
        %v733 = vpop.f32.mrb[0].mxu0
        %v734 = vadd.f32 0.0, %v733
        %v735 = vpop.f32.mrb[0].mxu0
        %v736 = vpop.f32.mrb[0].mxu0
        %v737 = vadd.f32 0.0, %v736
        %v738 = vpop.f32.mrb[0].mxu0
        %739 = vdwg.mxu0
        %v748 = vunpack.c.l.b16 %v634
        %v749 = vunpack.c.l.b16 %v635
        %v750 = vunpack.c.l.b16 %v636
        %v751 = vunpack.c.l.b16 %v637
        %v752 = vunpack.c.l.b16 %v638
        %v753 = vunpack.c.l.b16 %v639
        %v754 = vunpack.c.l.b16 %v640
        %v755 = vunpack.c.l.b16 %v641
        %v756 = vpack.c.b16 %v749, %v748
        %v757 = vpack.c.b16 %v751, %v750
        %v758 = vpack.c.b16 %v753, %v752
        %v759 = vpack.c.b16 %v755, %v754
        %v764 = vsel %vm389, %v658, 0
        %766 = vmatprep.subr.bf16.mxu0 0
        %767 = vmatpush1.bf16.msra.mxu0 %v756
        %768 = vmatprep.subr.bf16.mxu0 0
        %769 = vmatpush1.bf16.msra.mxu0 %v757
        %770 = vmatprep.subr.bf16.mxu0 0
        %771 = vmatpush1.bf16.msra.mxu0 %v758
        %772 = vmatprep.subr.bf16.mxu0 0
        %773 = vmatpush1.bf16.msra.mxu0 %v759
        %774 = vmatprep.subr.bf16.mxu0 0
        %775 = vmatpush1.bf16.msra.mxu0 0
        %776 = vmatprep.subr.bf16.mxu0 0
        %777 = vmatpush1.bf16.msra.mxu0 0
        %778 = vmatprep.subr.bf16.mxu0 0
        %779 = vmatpush1.bf16.msra.mxu0 0
        %780 = vmatprep.subr.bf16.mxu0 0
        %781 = vmatpush1.bf16.msra.mxu0 0
        %782 = vmatprep.subr.bf16.mxu0 0
        %783 = vmatpush1.bf16.msra.mxu0 0
        %784 = vmatprep.subr.bf16.mxu0 0
        %785 = vmatpush1.bf16.msra.mxu0 0
        %786 = vmatprep.subr.bf16.mxu0 0
        %787 = vmatpush1.bf16.msra.mxu0 0
        %788 = vmatprep.subr.bf16.mxu0 0
        %789 = vmatpush1.bf16.msra.mxu0 0
        %790 = vmatprep.subr.bf16.mxu0 0
        %791 = vmatpush1.bf16.msra.mxu0 0
        %792 = vmatprep.subr.bf16.mxu0 0
        %793 = vmatpush1.bf16.msra.mxu0 0
        %794 = vmatprep.subr.bf16.mxu0 0
        %795 = vmatpush1.bf16.msra.mxu0 0
        %796 = vmatprep.subr.bf16.mxu0 0
        %797 = vmatpush1.bf16.msra.mxu0 0
        %798 = vmatprep.mubr.bf16.mxu0 0
        %799 = vmatmul.mubr.bf16.gmra.mrb[0].mxu0 %v764
        %v800 = vpop.f32.mrb[0].mxu0
        %v801 = vadd.f32 %v734, %v800
        %v802 = vpop.f32.mrb[0].mxu0
        %v803 = vpop.f32.mrb[0].mxu0
        %v804 = vadd.f32 %v737, %v803
        %v805 = vpop.f32.mrb[0].mxu0
        %806 = vdwg.mxu0
        %v807 = vld [vmem:[#allocation3] sm:$0xe]
        %s808 = scalar_lea.vmem [#allocation9], 64
        %v809 = vld [vmem:[%s808] sm:$0xf]
        %v810 = vld [vmem:[%s808 + $0x4] sm:$0xf]
        %v811 = vld [vmem:[%s808 + $0x8] sm:$0xf]
        %v812 = vld [vmem:[%s808 + $0xc] sm:$0xf]
        %v813 = vld [vmem:[%s808 + $0x10] sm:$0xf]
        %v814 = vld [vmem:[%s808 + $0x14] sm:$0xf]
        %v815 = vld [vmem:[%s808 + $0x18] sm:$0xf]
        %v816 = vld [vmem:[%s808 + $0x1c] sm:$0xf]
        %v818 = vunpack.c.l.b16 %v807
        %v819 = vpack.c.b16 %v656, %v818
        %v820 = vrot.slane %v819, 1
        %v821 = vrot.slane %v659, 1
        %v822 = vsel %vm514, %v820, %v821
        %v831 = vunpack.c.l.b16 %v809
        %v832 = vunpack.c.l.b16 %v810
        %v833 = vunpack.c.l.b16 %v811
        %v834 = vunpack.c.l.b16 %v812
        %v835 = vunpack.c.l.b16 %v813
        %v836 = vunpack.c.l.b16 %v814
        %v837 = vunpack.c.l.b16 %v815
        %v838 = vunpack.c.l.b16 %v816
        %v839 = vpack.c.b16 %v832, %v831
        %v840 = vpack.c.b16 %v834, %v833
        %v841 = vpack.c.b16 %v836, %v835
        %v842 = vpack.c.b16 %v838, %v837
        %v848 = vsel %vm389, %v822, 0
        %850 = vmatprep.subr.bf16.mxu0 0
        %851 = vmatpush1.bf16.msra.mxu0 %v839
        %852 = vmatprep.subr.bf16.mxu0 0
        %853 = vmatpush1.bf16.msra.mxu0 %v840
        %854 = vmatprep.subr.bf16.mxu0 0
        %855 = vmatpush1.bf16.msra.mxu0 %v841
        %856 = vmatprep.subr.bf16.mxu0 0
        %857 = vmatpush1.bf16.msra.mxu0 %v842
        %858 = vmatprep.subr.bf16.mxu0 0
        %859 = vmatpush1.bf16.msra.mxu0 0
        %860 = vmatprep.subr.bf16.mxu0 0
        %861 = vmatpush1.bf16.msra.mxu0 0
        %862 = vmatprep.subr.bf16.mxu0 0
        %863 = vmatpush1.bf16.msra.mxu0 0
        %864 = vmatprep.subr.bf16.mxu0 0
        %865 = vmatpush1.bf16.msra.mxu0 0
        %866 = vmatprep.subr.bf16.mxu0 0
        %867 = vmatpush1.bf16.msra.mxu0 0
        %868 = vmatprep.subr.bf16.mxu0 0
        %869 = vmatpush1.bf16.msra.mxu0 0
        %870 = vmatprep.subr.bf16.mxu0 0
        %871 = vmatpush1.bf16.msra.mxu0 0
        %872 = vmatprep.subr.bf16.mxu0 0
        %873 = vmatpush1.bf16.msra.mxu0 0
        %874 = vmatprep.subr.bf16.mxu0 0
        %875 = vmatpush1.bf16.msra.mxu0 0
        %876 = vmatprep.subr.bf16.mxu0 0
        %877 = vmatpush1.bf16.msra.mxu0 0
        %878 = vmatprep.subr.bf16.mxu0 0
        %879 = vmatpush1.bf16.msra.mxu0 0
        %880 = vmatprep.subr.bf16.mxu0 0
        %881 = vmatpush1.bf16.msra.mxu0 0
        %882 = vmatprep.mubr.bf16.mxu0 0
        %883 = vmatmul.mubr.bf16.gmra.mrb[0].mxu0 %v848
        %v884 = vpop.f32.mrb[0].mxu0
        %v885 = vadd.f32 0.0, %v884
        %v886 = vpop.f32.mrb[0].mxu0
        %v887 = vpop.f32.mrb[0].mxu0
        %v888 = vadd.f32 0.0, %v887
        %v889 = vpop.f32.mrb[0].mxu0
        %890 = vdwg.mxu0
        %v891 = vadd.f32 %v801, %v885
        %v892 = vadd.f32 %v804, %v888
        %v893 = vld [vmem:[%s4] sm:$0x1]
        %v895 = vlaneseq
        %v896 = vshrl.u32 %v895, 7
        %v897 = vsub.s32 0, %v896
        %v898 = vrot.slane %v893, %v897
        %v900 = vadd.f32 %v891, %v898
        %v901 = vadd.f32 %v892, %v898
        %v902 = vunpack.c.l.bf16 %v290
        %v903 = vunpack.c.l.bf16 %v291
        %v904 = vadd.f32 %v900, %v902
        %v905 = vadd.f32 %v901, %v903
        %v906 = vmax.f32 %v904, 0.0
        %v907 = vmax.f32 %v905, 0.0
        %908 = vst.msk [vmem:[%s271] sm:$0xff] %vm389, %v906
        %909 = vst.msk [vmem:[%s271 + $0x8] sm:$0xff] %vm389, %v907
        %s910 = sand.u32 %s141, 1
        %s911 = scalar_lea.sflag [#allocation6], %s910
        %s912 = sand.u32 %s141, 1
        %s913 = smul.addr %s912, 16
        %s914 = scalar_lea.vmem [#allocation10], %s913
        // Predicated region
        $region53: #{tpu_custom_call.1} parent=39 // pred_check
          %p915 = pneg %p151
        $region54: #{tpu_custom_call.1} parent=39 // pred_check_branch
          %917 = sbr.rel (%p915) target = $region56
        $region55: #{tpu_custom_call.1} parent=39 // pred_region
          %s919 = ssub.s32 256, 256
          %920 = vsyncadd %s911, %s919
          %s921 = smul.addr %s23, 2
          %s922 = smul.addr %s921, 128
          %s923 = scalar_lea.hbm %s5, %s922
          %s924 = sshll.u32 %s914, 4
          %s925 = int_to_ptr.vmem [resolvable:$true] %s924
          %930 = dma.vmem_to_hbm [thread:$0]  %s925, 256, %s923, %s911, 128, 128, 8
        $region56: #{tpu_custom_call.1} parent=39 // pred_fallthru
          _
      $region40: #{tpu_custom_call.1} parent=5 // pred_fallthru
        _
      %p931 = scmp.le.s32.totalorder 2, %s18
      // Predicated region
      $region57: #{tpu_custom_call.1} parent=5 // pred_check
        %p932 = pneg %p931
      $region58: #{tpu_custom_call.1} parent=5 // pred_check_branch
        %934 = sbr.rel (%p932) target = $region60
      $region59: #{tpu_custom_call.1} parent=5 // pred_region
        %s935 = ssub.s32 %s18, 2
        // Predicated region
        $region61: #{tpu_custom_call.1} parent=59 // pred_check
          %p936 = pneg %p157
        $region62: #{tpu_custom_call.1} parent=59 // pred_check_branch
          %938 = sbr.rel (%p936) target = $region64
        $region63: #{tpu_custom_call.1} parent=59 // pred_region
          %s939 = sand.u32 %s142, 1
          %s940 = scalar_lea.sflag [#allocation6], %s939
          %s941 = sand.u32 %s142, 1
          %s942 = smul.addr %s941, 16
          %s943 = scalar_lea.vmem [#allocation10], %s942
          %944 = dma.done %s940, 256
        $region64: #{tpu_custom_call.1} parent=59 // pred_fallthru
          _
      $region60: #{tpu_custom_call.1} parent=5 // pred_fallthru
        _
    $region6: #{tpu_custom_call.1} parent=1 // loop_footer
      %s22 = sadd.s32 1, %s18
    $region7: #{tpu_custom_call.1} parent=1 // loop_footer_branch
      %17 = sbr.rel target = $region3
    $region8: #{tpu_custom_call.1} parent=1 // loop_exit
      _
    %945 = vsyncpa [#allocation5], 1
    %s946 = scalar_lea.sflag [#allocation5], 1
    %947 = vsyncpa %s946, 1
    %948 = vsyncpa [#allocation8], 1
    %949 = vsyncpa [#allocation6], 1
    %s950 = scalar_lea.sflag [#allocation6], 1
    %951 = vsyncpa %s950, 1

</llo_original>
